<compile_context>
chip_gen: v7x
topology: tpu7x:2x2x1
jax: 0.10.0
libtpu: 0.0.40
codegen_flags: <defaults>
</compile_context>

<pallas_src>
import functools

import jax
import jax.numpy as jnp
from jax.experimental import pallas as pl
from jax.experimental.pallas import tpu as pltpu


def _round_up(v, m):
    return (v + m - 1) // m * m


def _scse_core(x_f32, pooled_f32, w1, b1, w2, b2, ws, bs_scalar, out_dtype):
    """Shared cSE/sSE math in f32; returns bf16/out_dtype tile."""
    # ---- channel squeeze-excite (cSE): tiny MLP on the pooled vector ----
    h = jnp.dot(w1, pooled_f32, preferred_element_type=jnp.float32) + b1       # (Cr, 1)
    h = jnp.maximum(h, 0.0)                                                    # ReLU
    c_att = jax.nn.sigmoid(
        jnp.dot(w2, h, preferred_element_type=jnp.float32) + b2)               # (C, 1)
    # ---- spatial squeeze-excite (sSE): 1x1 conv C->1 over spatial (MXU) ----
    s_att = jax.nn.sigmoid(
        jnp.dot(ws, x_f32, preferred_element_type=jnp.float32) + bs_scalar)    # (1, T)
    # ---- factored combine: x * (cSE + sSE) ----
    return (x_f32 * (c_att + s_att)).astype(out_dtype)


def _single_pass_kernel(x_ref, w1_ref, b1_ref, w2_ref, b2_ref, ws_ref, bs_ref,
                        o_ref, *, inv_hw):
    x = x_ref[...].astype(jnp.float32)                        # (C, HWp), f32 math
    # True mean over H*W (padded columns are zero, divide by the real HW).
    pooled = jnp.sum(x, axis=1, keepdims=True) * inv_hw        # (C, 1)
    o_ref[...] = _scse_core(x, pooled, w1_ref[...], b1_ref[...], w2_ref[...],
                            b2_ref[...], ws_ref[...], bs_ref[0], o_ref.dtype)


def _tiled_kernel(p_ref, x_ref, w1_ref, b1_ref, w2_ref, b2_ref, ws_ref, bs_ref,
                  o_ref):
    x = x_ref[...].astype(jnp.float32)                        # (C, T_HW)
    pooled = p_ref[...]                                       # (C, 1), precomputed f32
    o_ref[...] = _scse_core(x, pooled, w1_ref[...], b1_ref[...], w2_ref[...],
                            b2_ref[...], ws_ref[...], bs_ref[0], o_ref.dtype)


def scse_attention(x_nchw, params, *, force_hw_tile=None,
                   vmem_budget_bytes=48 * 1024 * 1024):
    """SCSE forward.  x_nchw: (N, C, H, W) float32.  Returns (N, C, H, W) bfloat16."""
    N, C, H, W = x_nchw.shape
    HW = H * W
    HWp = _round_up(HW, 128)                   # lane-dense last dim
    Cr = params["w1"].shape[0]

    # bf16 HBM I/O (halves traffic on a memory-bound kernel); math stays f32 in-kernel.
    x_flat = x_nchw.reshape(N, C, HW).astype(jnp.bfloat16)
    x_pad = jnp.pad(x_flat, ((0, 0), (0, 0), (0, HWp - HW))) if HWp != HW else x_flat

    weight_args = (params["w1"], params["b1"], params["w2"], params["b2"],
                   params["ws"], params["bs"])

    w_specs = [
        pl.BlockSpec((Cr, C), lambda *idx: (0, 0)),                 # w1
        pl.BlockSpec((Cr, 1), lambda *idx: (0, 0)),                 # b1
        pl.BlockSpec((C, Cr), lambda *idx: (0, 0)),                 # w2
        pl.BlockSpec((C, 1), lambda *idx: (0, 0)),                  # b2
        pl.BlockSpec((1, C), lambda *idx: (0, 0)),                  # ws
        pl.BlockSpec(memory_space=pltpu.MemorySpace.SMEM),          # bs (scalar)
    ]

    block_bytes = C * HWp * 2                       # one bf16 (C, HWp) block
    single_pass_fits = (4 * block_bytes) <= vmem_budget_bytes   # dbl-buffered in + out
    use_single_pass = force_hw_tile is None and single_pass_fits

    if use_single_pass:
        vmem_limit = int(min(56 * 2**20, max(32 * 2**20, 6 * block_bytes)))
        out = pl.pallas_call(
            functools.partial(_single_pass_kernel, inv_hw=1.0 / HW),
            out_shape=jax.ShapeDtypeStruct((N, C, HWp), jnp.bfloat16),
            grid_spec=pltpu.PrefetchScalarGridSpec(
                num_scalar_prefetch=0,
                grid=(N,),
                in_specs=[pl.BlockSpec((None, C, HWp), lambda n: (n, 0, 0))]
                         + w_specs,
                out_specs=pl.BlockSpec((None, C, HWp), lambda n: (n, 0, 0)),
            ),
            compiler_params=pltpu.CompilerParams(
                dimension_semantics=("parallel",),
                vmem_limit_bytes=vmem_limit),
        )(x_pad, *weight_args)
    else:
        # Two-pass: pooled mean precomputed in f32 (tiny HBM cost), HW tiled so the
        # VMEM footprint stays bounded (v7x: 64 MiB) and pipelining is deep.
        pooled = jnp.mean(x_flat.astype(jnp.float32), axis=2, keepdims=True)  # (N, C, 1)

        if force_hw_tile is not None:
            t_hw = int(force_hw_tile)
        else:
            max_lanes = max(128, vmem_budget_bytes // (4 * C * 2))
            cand = min((max_lanes // 128) * 128, HWp)
            t_hw = 128
            while cand >= 128:
                if HWp % cand == 0:
                    t_hw = cand
                    break
                cand -= 128
        assert t_hw % 128 == 0 and HWp % t_hw == 0
        n_t = HWp // t_hw
        tile_bytes = C * t_hw * 2
        vmem_limit = int(min(56 * 2**20, max(32 * 2**20, 6 * tile_bytes)))

        out = pl.pallas_call(
            _tiled_kernel,
            out_shape=jax.ShapeDtypeStruct((N, C, HWp), jnp.bfloat16),
            grid_spec=pltpu.PrefetchScalarGridSpec(
                num_scalar_prefetch=0,
                grid=(N, n_t),
                in_specs=[pl.BlockSpec((None, C, 1), lambda n, t: (n, 0, 0)),
                          pl.BlockSpec((None, C, t_hw), lambda n, t: (n, 0, t))]
                         + w_specs,
                out_specs=pl.BlockSpec((None, C, t_hw), lambda n, t: (n, 0, t)),
            ),
            compiler_params=pltpu.CompilerParams(
                dimension_semantics=("parallel", "parallel"),
                vmem_limit_bytes=vmem_limit),
        )(pooled, x_pad, *weight_args)

    return out[:, :, :HW].reshape(N, C, H, W)


def scse_reference(x, p):
    """Pure-JAX f32 reference mirroring the PyTorch SCSEModule forward."""
    pooled = jnp.mean(x, axis=(2, 3))                               # (N, C)
    h = jnp.maximum(pooled @ p["w1"].T + p["b1"][:, 0], 0.0)        # (N, Cr)
    c_att = jax.nn.sigmoid(h @ p["w2"].T + p["b2"][:, 0])           # (N, C)
    s = jnp.einsum("nchw,oc->nohw", x, p["ws"]) + p["bs"][0]        # (N, 1, H, W)
    s_att = jax.nn.sigmoid(s)
    return x * c_att[:, :, None, None] + x * s_att


def make_params(key, C, reduction=16):
    Cr = max(C // reduction, 1)
    k1, k2, k3, k4, k5, k6 = jax.random.split(key, 6)
    # Shapes match the PyTorch 1x1 convs: Conv2d(C, Cr, 1), Conv2d(Cr, C, 1), Conv2d(C, 1, 1).
    return {
        "w1": jax.random.normal(k1, (Cr, C), jnp.float32) / jnp.sqrt(C),
        "b1": jax.random.normal(k2, (Cr, 1), jnp.float32) * 0.01,
        "w2": jax.random.normal(k3, (C, Cr), jnp.float32) / jnp.sqrt(Cr),
        "b2": jax.random.normal(k4, (C, 1), jnp.float32) * 0.01,
        "ws": jax.random.normal(k5, (1, C), jnp.float32) / jnp.sqrt(C),
        "bs": jax.random.normal(k6, (1,), jnp.float32) * 0.01,
    }


if __name__ == "__main__":
    key = jax.random.PRNGKey(0)
    kx1, kx2, kp = jax.random.split(key, 3)

    N, C = 2, 32                      # in_channels=32, reduction=16 -> Cr=2
    params = make_params(kp, C, reduction=16)

    # Case 1: lane-dense spatial (16*16 = 256), exercises the single-pass kernel.
    x1 = jax.random.normal(kx1, (N, C, 16, 16), jnp.float32)
    out1 = jax.block_until_ready(scse_attention(x1, params))
    ref1 = scse_reference(x1.astype(jnp.bfloat16).astype(jnp.float32), params)
    assert out1.shape == x1.shape
    assert jnp.max(jnp.abs(out1.astype(jnp.float32) - ref1)) < 5e-2, "single-pass mismatch"

    # Case 2: non-multiple-of-128 spatial (12*12 = 144, padded to 256) with forced
    # HW tiling -> exercises the padded, two-pass tiled path.
    x2 = jax.random.normal(kx2, (N, C, 12, 12), jnp.float32)
    out2 = jax.block_until_ready(scse_attention(x2, params, force_hw_tile=128))
    ref2 = scse_reference(x2.astype(jnp.bfloat16).astype(jnp.float32), params)
    assert out2.shape == x2.shape
    assert jnp.max(jnp.abs(out2.astype(jnp.float32) - ref2)) < 5e-2, "tiled-path mismatch"

    print("KERNEL_OK")
</pallas_src>

<mosaic_0001>
module attributes {stable_mosaic.version = 11 : i64} {
  func.func @_single_pass_kernel(%arg0: i32, %arg1: memref<1x32x256xbf16, #tpu.memory_space<vmem>>, %arg2: memref<2x32xf32, #tpu.memory_space<vmem>>, %arg3: memref<2x1xf32, #tpu.memory_space<vmem>>, %arg4: memref<32x2xf32, #tpu.memory_space<vmem>>, %arg5: memref<32x1xf32, #tpu.memory_space<vmem>>, %arg6: memref<1x32xf32, #tpu.memory_space<vmem>>, %arg7: memref<1xf32, #tpu.memory_space<smem>>, %arg8: memref<1x32x256xbf16, #tpu.memory_space<vmem>>) attributes {dimension_semantics = [#tpu.dimension_semantics<parallel>], iteration_bounds = array<i64: 2>, scalar_prefetch = 0 : i64, scratch_operands = 0 : i64, tpu.core_type = #tpu.core_type<tc>, window_params = [{transform_indices = @transform_0, window_bounds = array<i64: 1, 32, 256>}, {pipeline_mode = #tpu.pipeline_mode<synchronous>, transform_indices = @transform_1, window_bounds = array<i64: 2, 32>}, {pipeline_mode = #tpu.pipeline_mode<synchronous>, transform_indices = @transform_2, window_bounds = array<i64: 2, 1>}, {pipeline_mode = #tpu.pipeline_mode<synchronous>, transform_indices = @transform_3, window_bounds = array<i64: 32, 2>}, {pipeline_mode = #tpu.pipeline_mode<synchronous>, transform_indices = @transform_4, window_bounds = array<i64: 32, 1>}, {pipeline_mode = #tpu.pipeline_mode<synchronous>, transform_indices = @transform_5, window_bounds = array<i64: 1, 32>}, {transform_indices = @transform_6, window_bounds = array<i64: 1>}, {transform_indices = @transform_7, window_bounds = array<i64: 1, 32, 256>}]} {
    %c0 = arith.constant 0 : index
    %c0_0 = arith.constant 0 : index
    %c0_1 = arith.constant 0 : index
    %0 = vector.load %arg1[%c0, %c0_0, %c0_1] : memref<1x32x256xbf16, #tpu.memory_space<vmem>>, vector<1x32x256xbf16>
    %1 = vector.shape_cast %0 : vector<1x32x256xbf16> to vector<32x256xbf16>
    %2 = arith.extf %1 : vector<32x256xbf16> to vector<32x256xf32>
    %cst = arith.constant dense<0.000000e+00> : vector<32xf32>
    %3 = vector.multi_reduction <add>, %2, %cst [1] : vector<32x256xf32> to vector<32xf32>
    %4 = vector.shape_cast %3 : vector<32xf32> to vector<32x1xf32>
    %cst_2 = arith.constant 3.906250e-03 : f32
    %5 = vector.broadcast %cst_2 : f32 to vector<32x1xf32>
    %6 = arith.mulf %4, %5 : vector<32x1xf32>
    %c0_3 = arith.constant 0 : index
    %c0_4 = arith.constant 0 : index
    %7 = vector.load %arg2[%c0_3, %c0_4] : memref<2x32xf32, #tpu.memory_space<vmem>>, vector<2x32xf32>
    %c0_5 = arith.constant 0 : index
    %c0_6 = arith.constant 0 : index
    %8 = vector.load %arg3[%c0_5, %c0_6] : memref<2x1xf32, #tpu.memory_space<vmem>>, vector<2x1xf32>
    %c0_7 = arith.constant 0 : index
    %c0_8 = arith.constant 0 : index
    %9 = vector.load %arg4[%c0_7, %c0_8] : memref<32x2xf32, #tpu.memory_space<vmem>>, vector<32x2xf32>
    %c0_9 = arith.constant 0 : index
    %c0_10 = arith.constant 0 : index
    %10 = vector.load %arg5[%c0_9, %c0_10] : memref<32x1xf32, #tpu.memory_space<vmem>>, vector<32x1xf32>
    %c0_11 = arith.constant 0 : index
    %c0_12 = arith.constant 0 : index
    %11 = vector.load %arg6[%c0_11, %c0_12] : memref<1x32xf32, #tpu.memory_space<vmem>>, vector<1x32xf32>
    %c0_13 = arith.constant 0 : index
    %12 = memref.load %arg7[%c0_13] : memref<1xf32, #tpu.memory_space<smem>>
    %cst_14 = arith.constant dense<0.000000e+00> : vector<2x1xf32>
    %13 = tpu.matmul %7, %6, %cst_14 {dimension_numbers = #tpu.dot_dimension_numbers<[1], [0], [0], [1], [0, 0, 1, 1], [], []>} : vector<2x32xf32>, vector<32x1xf32>, vector<2x1xf32> -> vector<2x1xf32>
    %14 = arith.addf %13, %8 : vector<2x1xf32>
    %cst_15 = arith.constant 0.000000e+00 : f32
    %15 = vector.broadcast %cst_15 : f32 to vector<2x1xf32>
    %16 = arith.maximumf %14, %15 : vector<2x1xf32>
    %cst_16 = arith.constant dense<0.000000e+00> : vector<32x1xf32>
    %17 = tpu.matmul %9, %16, %cst_16 {dimension_numbers = #tpu.dot_dimension_numbers<[1], [0], [0], [1], [0, 0, 1, 1], [], []>} : vector<32x2xf32>, vector<2x1xf32>, vector<32x1xf32> -> vector<32x1xf32>
    %18 = arith.addf %17, %10 : vector<32x1xf32>
    %19 = arith.negf %18 : vector<32x1xf32>
    %20 = math.exp %19 : vector<32x1xf32>
    %cst_17 = arith.constant 1.000000e+00 : f32
    %21 = vector.broadcast %cst_17 : f32 to vector<32x1xf32>
    %22 = arith.addf %21, %20 : vector<32x1xf32>
    %23 = arith.divf %21, %22 : vector<32x1xf32>
    %cst_18 = arith.constant dense<0.000000e+00> : vector<1x256xf32>
    %24 = tpu.matmul %11, %2, %cst_18 {dimension_numbers = #tpu.dot_dimension_numbers<[1], [0], [0], [1], [0, 0, 1, 1], [], []>} : vector<1x32xf32>, vector<32x256xf32>, vector<1x256xf32> -> vector<1x256xf32>
    %25 = vector.broadcast %12 : f32 to vector<1x256xf32>
    %26 = arith.addf %24, %25 : vector<1x256xf32>
    %27 = arith.negf %26 : vector<1x256xf32>
    %28 = math.exp %27 : vector<1x256xf32>
    %cst_19 = arith.constant 1.000000e+00 : f32
    %29 = vector.broadcast %cst_19 : f32 to vector<1x256xf32>
    %30 = arith.addf %29, %28 : vector<1x256xf32>
    %31 = arith.divf %29, %30 : vector<1x256xf32>
    %32 = vector.broadcast %23 : vector<32x1xf32> to vector<32x256xf32>
    %33 = vector.broadcast %31 : vector<1x256xf32> to vector<32x256xf32>
    %34 = arith.addf %32, %33 : vector<32x256xf32>
    %35 = arith.mulf %2, %34 : vector<32x256xf32>
    %36 = arith.truncf %35 : vector<32x256xf32> to vector<32x256xbf16>
    %c0_20 = arith.constant 0 : index
    %c0_21 = arith.constant 0 : index
    %c0_22 = arith.constant 0 : index
    %37 = vector.load %arg8[%c0_20, %c0_21, %c0_22] : memref<1x32x256xbf16, #tpu.memory_space<vmem>>, vector<1x32x256xbf16>
    %38 = vector.shape_cast %37 : vector<1x32x256xbf16> to vector<32x256xbf16>
    %39 = vector.shape_cast %36 : vector<32x256xbf16> to vector<1x32x256xbf16>
    tpu.vector_store %arg8[%c0_20, %c0_21, %c0_22], %39 {strides = array<i32>} : memref<1x32x256xbf16, #tpu.memory_space<vmem>>, vector<1x32x256xbf16>,
    return
  }
  func.func @transform_0(%arg0: i32) -> (i32, i32, i32) {
    %c0_i32 = arith.constant 0 : i32
    %c0_i32_0 = arith.constant 0 : i32
    %c0_i32_1 = arith.constant 0 : i32
    return %arg0, %c0_i32, %c0_i32_0 : i32, i32, i32
  }
  func.func @transform_1(%arg0: i32) -> (i32, i32) {
    %c0_i32 = arith.constant 0 : i32
    %c0_i32_0 = arith.constant 0 : i32
    %c0_i32_1 = arith.constant 0 : i32
    return %c0_i32, %c0_i32_0 : i32, i32
  }
  func.func @transform_2(%arg0: i32) -> (i32, i32) {
    %c0_i32 = arith.constant 0 : i32
    %c0_i32_0 = arith.constant 0 : i32
    %c0_i32_1 = arith.constant 0 : i32
    return %c0_i32, %c0_i32_0 : i32, i32
  }
  func.func @transform_3(%arg0: i32) -> (i32, i32) {
    %c0_i32 = arith.constant 0 : i32
    %c0_i32_0 = arith.constant 0 : i32
    %c0_i32_1 = arith.constant 0 : i32
    return %c0_i32, %c0_i32_0 : i32, i32
  }
  func.func @transform_4(%arg0: i32) -> (i32, i32) {
    %c0_i32 = arith.constant 0 : i32
    %c0_i32_0 = arith.constant 0 : i32
    %c0_i32_1 = arith.constant 0 : i32
    return %c0_i32, %c0_i32_0 : i32, i32
  }
  func.func @transform_5(%arg0: i32) -> (i32, i32) {
    %c0_i32 = arith.constant 0 : i32
    %c0_i32_0 = arith.constant 0 : i32
    %c0_i32_1 = arith.constant 0 : i32
    return %c0_i32, %c0_i32_0 : i32, i32
  }
  func.func @transform_6(%arg0: i32) -> i32 {
    %c0_i32 = arith.constant 0 : i32
    %c0_i32_0 = arith.constant 0 : i32
    return %c0_i32 : i32
  }
  func.func @transform_7(%arg0: i32) -> (i32, i32, i32) {
    %c0_i32 = arith.constant 0 : i32
    %c0_i32_0 = arith.constant 0 : i32
    %c0_i32_1 = arith.constant 0 : i32
    return %arg0, %c0_i32, %c0_i32_0 : i32, i32, i32
  }
}

</mosaic_0001>

<llo_original>
// kernel: tpu_custom_call.1
$region0: #{tpu_custom_call.1}
  #allocation0 [shape = 'u32[]', space=smem, size = 0x4, offset = 0x4, fixed_abs, tag = 'smem constant byte address 0x4 - core index']
  #allocation1 [shape = 'u32[144,128]{1,0:T(1,128)}', space=vmem, size = 0x12000, scoped, tag = 'internal scratch']
  #allocation2 [shape = 'f32[1]{0:T(128)S(6)}', space=smem, size = 0x200, scoped, tag = 'scoped memory for tpu_custom_call.1']
  %s0 = inlined_call_operand.vmem [shape: bf16[2,32,256], index: 0, kind: input, shape index: {}]
  %s1 = inlined_call_operand.vmem [shape: f32[2,32], index: 1, kind: input, shape index: {}]
  %s2 = inlined_call_operand.vmem [shape: f32[2,1], index: 2, kind: input, shape index: {}]
  %s3 = inlined_call_operand.vmem [shape: f32[32,2], index: 3, kind: input, shape index: {}]
  %s4 = inlined_call_operand.vmem [shape: f32[32,1], index: 4, kind: input, shape index: {}]
  %s5 = inlined_call_operand.vmem [shape: f32[1,32], index: 5, kind: input, shape index: {}]
  %s6 = inlined_call_operand.<no memory space> [shape: f32[1], index: 6, kind: input, shape index: {}]
  %s7 = inlined_call_operand.hbm [shape: bf16[2,32,256], index: 7, kind: output, shape index: {}]
  %s8 = sld [smem:[#allocation0]]
  $region61: #{tpu_custom_call.1} parent=0
    _
  %s10 = ssub.s32 1, %s8
  %s11 = scalar_select 0, %s10, %s8
  %12 = sst [smem:[#allocation2]] %s6
  $region1: #{tpu_custom_call.1} parent=0
    #allocation3 [shape = 'u8[32768]{0}', space=vmem, size = 0x8000, scoped, tag = 'output window, operand 0']
    #allocation4 [shape = 's32[2]{0}', space=sflag, size = 0x8, scoped, tag = 'scoped memory for tpu_custom_call.1']
    %13 = vsyncpa [#allocation4], 0
    %s14 = scalar_lea.sflag [#allocation4], 1
    %15 = vsyncpa %s14, 0
    loop: start=0, step=1, limit=4
    $region2: #{tpu_custom_call.1} parent=1 // loop_pre_header
      _
    $region3: #{tpu_custom_call.1} parent=1 // loop_header
      %s17 = sphi 0, %s21
      %p18 = scmp.ge.s32.totalorder %s17, 4
      %s27 = sphi 0, %s29
      %s30 = sphi 0, %s27
      %s31 = sphi 0, %s30
      %s47 = sphi 0, %s31
      %s51 = sphi 0, %s51
      %s53 = sphi 0, %s51
      %s54 = sphi 0, %s53
      %s68 = sphi 0, %s54
      %s72 = sphi 0, %s72
      %s74 = sphi 0, %s72
      %s75 = sphi 0, %s74
      %s89 = sphi 0, %s75
      %s93 = sphi 0, %s93
      %s95 = sphi 0, %s93
      %s96 = sphi 0, %s95
      %s110 = sphi 0, %s96
      %s114 = sphi 0, %s114
      %s116 = sphi 0, %s114
      %s117 = sphi 0, %s116
      %s131 = sphi 0, %s117
      %s135 = sphi 0, %s135
      %s137 = sphi 0, %s135
      %s138 = sphi 0, %s137
      %s152 = sphi 0, %s138
      %s156 = sphi 0, %s156
      %s158 = sphi 0, %s156
      %s159 = sphi 0, %s158
      %s173 = sphi 0, %s159
      %s179 = sphi 0, %s181
      %s182 = sphi 0, %s179
      %s183 = sphi 0, %s182
      %s199 = sphi 0, %s183
    $region4: #{tpu_custom_call.1} parent=1 // loop_header_branch
      %20 = sbr.rel (%p18) target = $region8
    $region5: #{tpu_custom_call.1} parent=1 // loop_body
      %s22 = ssub.s32 %s17, 1
      %s23 = ssub.s32 %s17, 2
      %s24 = sadd.s32 %s17, 1
      %s25 = ssub.s32 %s17, %s24
      %p26 = scmp.eq.s32.totalorder %s25, 0
      %s28 = sadd.s32 %s27, 1
      %s29 = scalar_select %p26, %s27, %s28
      %p32 = pneg %p26
      %p33 = scmp.eq.s32.totalorder %s17, 1
      %p34 = por %p32, %p33
      %p35 = scmp.ne.s32.totalorder %s27, %s30
      %p36 = scmp.eq.s32.totalorder %s17, 0
      %p37 = por %p35, %p36
      %p38 = scmp.ne.s32.totalorder %s27, %s30
      %p39 = scmp.eq.s32.totalorder %s22, 1
      %p40 = por %p38, %p39
      %p41 = scmp.ne.s32.totalorder %s30, %s31
      %p42 = scmp.eq.s32.totalorder %s22, 0
      %p43 = por %p41, %p42
      %p44 = scmp.ne.s32.totalorder %s30, %s31
      %p45 = scmp.eq.s32.totalorder %s23, 1
      %p46 = por %p44, %p45
      %p48 = scmp.ne.s32.totalorder %s31, %s47
      %p49 = scmp.eq.s32.totalorder %s23, 0
      %p50 = por %p48, %p49
      %s52 = sadd.s32 %s51, 1
      %p55 = scmp.eq.s32.totalorder %s17, 1
      %p56 = scmp.ne.s32.totalorder %s51, %s53
      %p57 = scmp.eq.s32.totalorder %s17, 0
      %p58 = por %p56, %p57
      %p59 = scmp.ne.s32.totalorder %s51, %s53
      %p60 = scmp.eq.s32.totalorder %s22, 1
      %p61 = por %p59, %p60
      %p62 = scmp.ne.s32.totalorder %s53, %s54
      %p63 = scmp.eq.s32.totalorder %s22, 0
      %p64 = por %p62, %p63
      %p65 = scmp.ne.s32.totalorder %s53, %s54
      %p66 = scmp.eq.s32.totalorder %s23, 1
      %p67 = por %p65, %p66
      %p69 = scmp.ne.s32.totalorder %s54, %s68
      %p70 = scmp.eq.s32.totalorder %s23, 0
      %p71 = por %p69, %p70
      %s73 = sadd.s32 %s72, 1
      %p76 = scmp.eq.s32.totalorder %s17, 1
      %p77 = scmp.ne.s32.totalorder %s72, %s74
      %p78 = scmp.eq.s32.totalorder %s17, 0
      %p79 = por %p77, %p78
      %p80 = scmp.ne.s32.totalorder %s72, %s74
      %p81 = scmp.eq.s32.totalorder %s22, 1
      %p82 = por %p80, %p81
      %p83 = scmp.ne.s32.totalorder %s74, %s75
      %p84 = scmp.eq.s32.totalorder %s22, 0
      %p85 = por %p83, %p84
      %p86 = scmp.ne.s32.totalorder %s74, %s75
      %p87 = scmp.eq.s32.totalorder %s23, 1
      %p88 = por %p86, %p87
      %p90 = scmp.ne.s32.totalorder %s75, %s89
      %p91 = scmp.eq.s32.totalorder %s23, 0
      %p92 = por %p90, %p91
      %s94 = sadd.s32 %s93, 1
      %p97 = scmp.eq.s32.totalorder %s17, 1
      %p98 = scmp.ne.s32.totalorder %s93, %s95
      %p99 = scmp.eq.s32.totalorder %s17, 0
      %p100 = por %p98, %p99
      %p101 = scmp.ne.s32.totalorder %s93, %s95
      %p102 = scmp.eq.s32.totalorder %s22, 1
      %p103 = por %p101, %p102
      %p104 = scmp.ne.s32.totalorder %s95, %s96
      %p105 = scmp.eq.s32.totalorder %s22, 0
      %p106 = por %p104, %p105
      %p107 = scmp.ne.s32.totalorder %s95, %s96
      %p108 = scmp.eq.s32.totalorder %s23, 1
      %p109 = por %p107, %p108
      %p111 = scmp.ne.s32.totalorder %s96, %s110
      %p112 = scmp.eq.s32.totalorder %s23, 0
      %p113 = por %p111, %p112
      %s115 = sadd.s32 %s114, 1
      %p118 = scmp.eq.s32.totalorder %s17, 1
      %p119 = scmp.ne.s32.totalorder %s114, %s116
      %p120 = scmp.eq.s32.totalorder %s17, 0
      %p121 = por %p119, %p120
      %p122 = scmp.ne.s32.totalorder %s114, %s116
      %p123 = scmp.eq.s32.totalorder %s22, 1
      %p124 = por %p122, %p123
      %p125 = scmp.ne.s32.totalorder %s116, %s117
      %p126 = scmp.eq.s32.totalorder %s22, 0
      %p127 = por %p125, %p126
      %p128 = scmp.ne.s32.totalorder %s116, %s117
      %p129 = scmp.eq.s32.totalorder %s23, 1
      %p130 = por %p128, %p129
      %p132 = scmp.ne.s32.totalorder %s117, %s131
      %p133 = scmp.eq.s32.totalorder %s23, 0
      %p134 = por %p132, %p133
      %s136 = sadd.s32 %s135, 1
      %p139 = scmp.eq.s32.totalorder %s17, 1
      %p140 = scmp.ne.s32.totalorder %s135, %s137
      %p141 = scmp.eq.s32.totalorder %s17, 0
      %p142 = por %p140, %p141
      %p143 = scmp.ne.s32.totalorder %s135, %s137
      %p144 = scmp.eq.s32.totalorder %s22, 1
      %p145 = por %p143, %p144
      %p146 = scmp.ne.s32.totalorder %s137, %s138
      %p147 = scmp.eq.s32.totalorder %s22, 0
      %p148 = por %p146, %p147
      %p149 = scmp.ne.s32.totalorder %s137, %s138
      %p150 = scmp.eq.s32.totalorder %s23, 1
      %p151 = por %p149, %p150
      %p153 = scmp.ne.s32.totalorder %s138, %s152
      %p154 = scmp.eq.s32.totalorder %s23, 0
      %p155 = por %p153, %p154
      %s157 = sadd.s32 %s156, 1
      %p160 = scmp.eq.s32.totalorder %s17, 1
      %p161 = scmp.ne.s32.totalorder %s156, %s158
      %p162 = scmp.eq.s32.totalorder %s17, 0
      %p163 = por %p161, %p162
      %p164 = scmp.ne.s32.totalorder %s156, %s158
      %p165 = scmp.eq.s32.totalorder %s22, 1
      %p166 = por %p164, %p165
      %p167 = scmp.ne.s32.totalorder %s158, %s159
      %p168 = scmp.eq.s32.totalorder %s22, 0
      %p169 = por %p167, %p168
      %p170 = scmp.ne.s32.totalorder %s158, %s159
      %p171 = scmp.eq.s32.totalorder %s23, 1
      %p172 = por %p170, %p171
      %p174 = scmp.ne.s32.totalorder %s159, %s173
      %p175 = scmp.eq.s32.totalorder %s23, 0
      %p176 = por %p174, %p175
      %s177 = ssub.s32 %s17, %s24
      %p178 = scmp.eq.s32.totalorder %s177, 0
      %s180 = sadd.s32 %s179, 1
      %s181 = scalar_select %p178, %s179, %s180
      %p184 = pneg %p178
      %p185 = scmp.eq.s32.totalorder %s17, 1
      %p186 = por %p184, %p185
      %p187 = scmp.ne.s32.totalorder %s179, %s182
      %p188 = scmp.eq.s32.totalorder %s17, 0
      %p189 = por %p187, %p188
      %p190 = scmp.ne.s32.totalorder %s179, %s182
      %p191 = scmp.eq.s32.totalorder %s22, 1
      %p192 = por %p190, %p191
      %p193 = scmp.ne.s32.totalorder %s182, %s183
      %p194 = scmp.eq.s32.totalorder %s22, 0
      %p195 = por %p193, %p194
      %p196 = scmp.ne.s32.totalorder %s182, %s183
      %p197 = scmp.eq.s32.totalorder %s23, 1
      %p198 = por %p196, %p197
      %p200 = scmp.ne.s32.totalorder %s183, %s199
      %p201 = scmp.eq.s32.totalorder %s23, 0
      %p202 = por %p200, %p201
      %p203 = scmp.le.s32.totalorder 1, %s17
      %p204 = scmp.lt.s32.totalorder %s17, 3
      %p205 = pnand %p203, %p204
      %p206 = pneg %p205
      // Predicated region
      $region9: #{tpu_custom_call.1} parent=5 // pred_check
        _
      $region10: #{tpu_custom_call.1} parent=5 // pred_check_branch
        %208 = sbr.rel (%p205) target = $region12
      $region11: #{tpu_custom_call.1} parent=5 // pred_region
        %s209 = ssub.s32 %s17, 1
        // Predicated region
        $region13: #{tpu_custom_call.1} parent=11 // pred_check
          %p210 = pneg %p64
        $region14: #{tpu_custom_call.1} parent=11 // pred_check_branch
          %212 = sbr.rel (%p210) target = $region16
        $region15: #{tpu_custom_call.1} parent=11 // pred_region
          _
        $region16: #{tpu_custom_call.1} parent=11 // pred_fallthru
          _
        // Predicated region
        $region17: #{tpu_custom_call.1} parent=11 // pred_check
          %p213 = pneg %p85
        $region18: #{tpu_custom_call.1} parent=11 // pred_check_branch
          %215 = sbr.rel (%p213) target = $region20
        $region19: #{tpu_custom_call.1} parent=11 // pred_region
          _
        $region20: #{tpu_custom_call.1} parent=11 // pred_fallthru
          _
        // Predicated region
        $region21: #{tpu_custom_call.1} parent=11 // pred_check
          %p216 = pneg %p106
        $region22: #{tpu_custom_call.1} parent=11 // pred_check_branch
          %218 = sbr.rel (%p216) target = $region24
        $region23: #{tpu_custom_call.1} parent=11 // pred_region
          _
        $region24: #{tpu_custom_call.1} parent=11 // pred_fallthru
          _
        // Predicated region
        $region25: #{tpu_custom_call.1} parent=11 // pred_check
          %p219 = pneg %p127
        $region26: #{tpu_custom_call.1} parent=11 // pred_check_branch
          %221 = sbr.rel (%p219) target = $region28
        $region27: #{tpu_custom_call.1} parent=11 // pred_region
          _
        $region28: #{tpu_custom_call.1} parent=11 // pred_fallthru
          _
        // Predicated region
        $region29: #{tpu_custom_call.1} parent=11 // pred_check
          %p222 = pneg %p148
        $region30: #{tpu_custom_call.1} parent=11 // pred_check_branch
          %224 = sbr.rel (%p222) target = $region32
        $region31: #{tpu_custom_call.1} parent=11 // pred_region
          _
        $region32: #{tpu_custom_call.1} parent=11 // pred_fallthru
          _
        // Predicated region
        $region33: #{tpu_custom_call.1} parent=11 // pred_check
          %p225 = pneg %p169
        $region34: #{tpu_custom_call.1} parent=11 // pred_check_branch
          %227 = sbr.rel (%p225) target = $region36
        $region35: #{tpu_custom_call.1} parent=11 // pred_region
          _
        $region36: #{tpu_custom_call.1} parent=11 // pred_fallthru
          _
      $region12: #{tpu_custom_call.1} parent=5 // pred_fallthru
        _
      %p228 = scmp.lt.s32.totalorder %s17, 2
      // Predicated region
      $region37: #{tpu_custom_call.1} parent=5 // pred_check
        %p229 = pneg %p228
      $region38: #{tpu_custom_call.1} parent=5 // pred_check_branch
        %231 = sbr.rel (%p229) target = $region40
      $region39: #{tpu_custom_call.1} parent=5 // pred_region
        // Predicated region
        $region41: #{tpu_custom_call.1} parent=39 // pred_check
          %p232 = pneg %p37
        $region42: #{tpu_custom_call.1} parent=39 // pred_check_branch
          %234 = sbr.rel (%p232) target = $region44
        $region43: #{tpu_custom_call.1} parent=39 // pred_region
          %p235 = scmp.lt.s32.totalorder %s17, 1
          %s236 = scalar_select %p235, %s17, 1
          %s237 = smul.addr %s236, 8
          %s238 = smul.addr %s237, 4
          %s239 = scalar_lea.vmem %s0, %s238
        $region44: #{tpu_custom_call.1} parent=39 // pred_fallthru
          _
      $region40: #{tpu_custom_call.1} parent=5 // pred_fallthru
        _
      %p240 = scmp.le.s32.totalorder 1, %s17
      %p241 = scmp.lt.s32.totalorder %s17, 3
      %p242 = pnand %p240, %p241
      %p243 = pneg %p242
      // Predicated region
      $region45: #{tpu_custom_call.1} parent=5 // pred_check
        _
      $region46: #{tpu_custom_call.1} parent=5 // pred_check_branch
        %245 = sbr.rel (%p242) target = $region48
      $region47: #{tpu_custom_call.1} parent=5 // pred_region
        %s246 = ssub.s32 %s17, 1
        %p247 = scmp.lt.s32.totalorder %s22, 1
        %s248 = scalar_select %p247, %s22, 1
        %s249 = smul.addr %s248, 8
        %s250 = smul.addr %s249, 4
        %s251 = scalar_lea.vmem %s0, %s250
        %p252 = pneg %p43
        %p253 = pneg %p40
        %p254 = pneg %p64
        %p255 = pneg %p61
        %p256 = pneg %p85
        %p257 = pneg %p82
        %p258 = pneg %p106
        %p259 = pneg %p103
        %p260 = pneg %p127
        %p261 = pneg %p124
        %p262 = pneg %p148
        %p263 = pneg %p145
        %p264 = pneg %p169
        %p265 = pneg %p166
        %p266 = pneg %p195
        %p267 = pneg %p192
        %s268 = sand.u32 %s182, 1
        %s269 = scalar_lea.sflag [#allocation4], %s268
        %s270 = sand.u32 %s182, 1
        %s271 = smul.addr %s270, 32
        %s272 = scalar_lea.vmem [#allocation3], %s271
        %p273 = scmp.lt.s32.totalorder %s22, 1
        %s274 = scalar_select %p273, %s22, 1
        %s275 = smul.addr %s274, 8
        %s276 = smul.addr %s275, 4
        %s277 = scalar_lea.vmem %s0, %s276
        %v278 = vld [vmem:[%s277] sm:$0xff]
        %v279 = vld [vmem:[%s277 + $0x8] sm:$0xff]
        %v280 = vld [vmem:[%s277 + $0x10] sm:$0xff]
        %v281 = vld [vmem:[%s277 + $0x18] sm:$0xff]
        %v282 = vunpack.c.l.bf16 %v278
        %v283 = vunpack.c.h.bf16 %v278
        %v284 = vunpack.c.l.bf16 %v279
        %v285 = vunpack.c.h.bf16 %v279
        %v286 = vunpack.c.l.bf16 %v280
        %v287 = vunpack.c.h.bf16 %v280
        %v288 = vunpack.c.l.bf16 %v281
        %v289 = vunpack.c.h.bf16 %v281
        %v290 = vadd.f32 %v282, %v283
        %291 = vadd.xlane.f32.xlu0 %v290
        %v292 = vpop.xlane.xlu0 %291
        %v293 = vadd.f32 %v284, %v285
        %294 = vadd.xlane.f32.xlu0 %v293
        %v295 = vpop.xlane.xlu0 %294
        %v296 = vadd.f32 %v286, %v287
        %297 = vadd.xlane.f32.xlu0 %v296
        %v298 = vpop.xlane.xlu0 %297
        %v299 = vadd.f32 %v288, %v289
        %300 = vadd.xlane.f32.xlu0 %v299
        %v301 = vpop.xlane.xlu0 %300
        %v302 = vmul.f32 %v292, 0.00390625
        %v303 = vmul.f32 %v295, 0.00390625
        %v304 = vmul.f32 %v298, 0.00390625
        %v305 = vmul.f32 %v301, 0.00390625
        %v306 = vld [vmem:[%s1] sm:$0x3]
        %v307 = vld [vmem:[%s2] sm:$0x3]
        %v308 = vld [vmem:[%s3] sm:$0xff]
        %v309 = vld [vmem:[%s3 + $0x8] sm:$0xff]
        %v310 = vld [vmem:[%s3 + $0x10] sm:$0xff]
        %v311 = vld [vmem:[%s3 + $0x18] sm:$0xff]
        %v312 = vld [vmem:[%s4] sm:$0xff]
        %v313 = vld [vmem:[%s4 + $0x8] sm:$0xff]
        %v314 = vld [vmem:[%s4 + $0x10] sm:$0xff]
        %v315 = vld [vmem:[%s4 + $0x18] sm:$0xff]
        %v316 = vld [vmem:[%s5] sm:$0x1]
        %s317 = sld [smem:[#allocation2]]
        %vm318 = vcmask 261120
        %v320 = vsel %vm318, %v306, 0
        %322 = vmatprep.subr.mxu0 0.0
        %323 = vmatpush1.msra.mxu0 %v302
        %324 = vmatprep.subr.mxu0 0.0
        %325 = vmatpush1.msra.mxu0 %v303
        %326 = vmatprep.subr.mxu0 0.0
        %327 = vmatpush1.msra.mxu0 %v304
        %328 = vmatprep.subr.mxu0 0.0
        %329 = vmatpush1.msra.mxu0 %v305
        %330 = vmatprep.subr.mxu0 0.0
        %331 = vmatpush1.msra.mxu0 0.0
        %332 = vmatprep.subr.mxu0 0.0
        %333 = vmatpush1.msra.mxu0 0.0
        %334 = vmatprep.subr.mxu0 0.0
        %335 = vmatpush1.msra.mxu0 0.0
        %336 = vmatprep.subr.mxu0 0.0
        %337 = vmatpush1.msra.mxu0 0.0
        %338 = vmatprep.subr.mxu0 0.0
        %339 = vmatpush1.msra.mxu0 0.0
        %340 = vmatprep.subr.mxu0 0.0
        %341 = vmatpush1.msra.mxu0 0.0
        %342 = vmatprep.subr.mxu0 0.0
        %343 = vmatpush1.msra.mxu0 0.0
        %344 = vmatprep.subr.mxu0 0.0
        %345 = vmatpush1.msra.mxu0 0.0
        %346 = vmatprep.subr.mxu0 0.0
        %347 = vmatpush1.msra.mxu0 0.0
        %348 = vmatprep.subr.mxu0 0.0
        %349 = vmatpush1.msra.mxu0 0.0
        %350 = vmatprep.subr.mxu0 0.0
        %351 = vmatpush1.msra.mxu0 0.0
        %352 = vmatprep.subr.mxu0 0.0
        %353 = vmatpush1.msra.mxu0 0.0
        %354 = vmatprep.subr.mxu0 0.0
        %355 = vmatpush1.msra.mxu0 0.0
        %356 = vmatprep.subr.mxu0 0.0
        %357 = vmatpush1.msra.mxu0 0.0
        %358 = vmatprep.subr.mxu0 0.0
        %359 = vmatpush1.msra.mxu0 0.0
        %360 = vmatprep.subr.mxu0 0.0
        %361 = vmatpush1.msra.mxu0 0.0
        %362 = vmatprep.subr.mxu0 0.0
        %363 = vmatpush1.msra.mxu0 0.0
        %364 = vmatprep.subr.mxu0 0.0
        %365 = vmatpush1.msra.mxu0 0.0
        %366 = vmatprep.subr.mxu0 0.0
        %367 = vmatpush1.msra.mxu0 0.0
        %368 = vmatprep.subr.mxu0 0.0
        %369 = vmatpush1.msra.mxu0 0.0
        %370 = vmatprep.subr.mxu0 0.0
        %371 = vmatpush1.msra.mxu0 0.0
        %372 = vmatprep.subr.mxu0 0.0
        %373 = vmatpush1.msra.mxu0 0.0
        %374 = vmatprep.subr.mxu0 0.0
        %375 = vmatpush1.msra.mxu0 0.0
        %376 = vmatprep.subr.mxu0 0.0
        %377 = vmatpush1.msra.mxu0 0.0
        %378 = vmatprep.subr.mxu0 0.0
        %379 = vmatpush1.msra.mxu0 0.0
        %380 = vmatprep.subr.mxu0 0.0
        %381 = vmatpush1.msra.mxu0 0.0
        %382 = vmatprep.subr.mxu0 0.0
        %383 = vmatpush1.msra.mxu0 0.0
        %384 = vmatprep.subr.mxu0 0.0
        %385 = vmatpush1.msra.mxu0 0.0
        %386 = vmatprep.mubr.f32.mxu0 0.0
        %387 = vmatmul.mubr.f32.gmra.mrb[0].mxu0 %v320
        %v388 = vpop.f32.mrb[0].mxu0
        %v389 = vadd.f32 %v307, %v388
        %v390 = vpop.f32.mrb[0].mxu0
        %391 = vdwg.mxu0
        %v392 = vmax.f32 %v389, 0.0
        %vm393 = vcmask 15360
        %v395 = vsel %vm393, %v308, 0
        %v398 = vsel %vm393, %v309, 0
        %v401 = vsel %vm393, %v310, 0
        %v404 = vsel %vm393, %v311, 0
        %vm406 = vcmask 1041408
        %v408 = vsel %vm406, %v392, 0
        %410 = vmatprep.subr.mxu0 0.0
        %411 = vmatpush1.msra.mxu0 %v408
        %412 = vmatprep.subr.mxu0 0.0
        %413 = vmatpush1.msra.mxu0 0.0
        %414 = vmatprep.subr.mxu0 0.0
        %415 = vmatpush1.msra.mxu0 0.0
        %416 = vmatprep.subr.mxu0 0.0
        %417 = vmatpush1.msra.mxu0 0.0
        %418 = vmatprep.subr.mxu0 0.0
        %419 = vmatpush1.msra.mxu0 0.0
        %420 = vmatprep.subr.mxu0 0.0
        %421 = vmatpush1.msra.mxu0 0.0
        %422 = vmatprep.subr.mxu0 0.0
        %423 = vmatpush1.msra.mxu0 0.0
        %424 = vmatprep.subr.mxu0 0.0
        %425 = vmatpush1.msra.mxu0 0.0
        %426 = vmatprep.subr.mxu0 0.0
        %427 = vmatpush1.msra.mxu0 0.0
        %428 = vmatprep.subr.mxu0 0.0
        %429 = vmatpush1.msra.mxu0 0.0
        %430 = vmatprep.subr.mxu0 0.0
        %431 = vmatpush1.msra.mxu0 0.0
        %432 = vmatprep.subr.mxu0 0.0
        %433 = vmatpush1.msra.mxu0 0.0
        %434 = vmatprep.subr.mxu0 0.0
        %435 = vmatpush1.msra.mxu0 0.0
        %436 = vmatprep.subr.mxu0 0.0
        %437 = vmatpush1.msra.mxu0 0.0
        %438 = vmatprep.subr.mxu0 0.0
        %439 = vmatpush1.msra.mxu0 0.0
        %440 = vmatprep.subr.mxu0 0.0
        %441 = vmatpush1.msra.mxu0 0.0
        %442 = vmatprep.subr.mxu0 0.0
        %443 = vmatpush1.msra.mxu0 0.0
        %444 = vmatprep.subr.mxu0 0.0
        %445 = vmatpush1.msra.mxu0 0.0
        %446 = vmatprep.subr.mxu0 0.0
        %447 = vmatpush1.msra.mxu0 0.0
        %448 = vmatprep.subr.mxu0 0.0
        %449 = vmatpush1.msra.mxu0 0.0
        %450 = vmatprep.subr.mxu0 0.0
        %451 = vmatpush1.msra.mxu0 0.0
        %452 = vmatprep.subr.mxu0 0.0
        %453 = vmatpush1.msra.mxu0 0.0
        %454 = vmatprep.subr.mxu0 0.0
        %455 = vmatpush1.msra.mxu0 0.0
        %456 = vmatprep.subr.mxu0 0.0
        %457 = vmatpush1.msra.mxu0 0.0
        %458 = vmatprep.subr.mxu0 0.0
        %459 = vmatpush1.msra.mxu0 0.0
        %460 = vmatprep.subr.mxu0 0.0
        %461 = vmatpush1.msra.mxu0 0.0
        %462 = vmatprep.subr.mxu0 0.0
        %463 = vmatpush1.msra.mxu0 0.0
        %464 = vmatprep.subr.mxu0 0.0
        %465 = vmatpush1.msra.mxu0 0.0
        %466 = vmatprep.subr.mxu0 0.0
        %467 = vmatpush1.msra.mxu0 0.0
        %468 = vmatprep.subr.mxu0 0.0
        %469 = vmatpush1.msra.mxu0 0.0
        %470 = vmatprep.subr.mxu0 0.0
        %471 = vmatpush1.msra.mxu0 0.0
        %472 = vmatprep.subr.mxu0 0.0
        %473 = vmatpush1.msra.mxu0 0.0
        %474 = vmatprep.mubr.f32.mxu0 0.0
        %475 = vmatmul.mubr.f32.gmra.mrb[0].mxu0 %v395
        %v476 = vpop.f32.mrb[0].mxu0
        %v477 = vadd.f32 %v312, %v476
        %v478 = vpop.f32.mrb[0].mxu0
        %479 = vmatprep.mubr.f32.mxu0 0.0
        %480 = vmatmul.mubr.f32.gmra.mrb[0].mxu0 %v398
        %v481 = vpop.f32.mrb[0].mxu0
        %v482 = vadd.f32 %v313, %v481
        %v483 = vpop.f32.mrb[0].mxu0
        %484 = vmatprep.mubr.f32.mxu0 0.0
        %485 = vmatmul.mubr.f32.gmra.mrb[0].mxu0 %v401
        %v486 = vpop.f32.mrb[0].mxu0
        %v487 = vadd.f32 %v314, %v486
        %v488 = vpop.f32.mrb[0].mxu0
        %489 = vmatprep.mubr.f32.mxu0 0.0
        %490 = vmatmul.mubr.f32.gmra.mrb[0].mxu0 %v404
        %v491 = vpop.f32.mrb[0].mxu0
        %v492 = vadd.f32 %v315, %v491
        %v493 = vpop.f32.mrb[0].mxu0
        %494 = vdwg.mxu0
        %v495 = vxor.u32 %v477, 2147483648
        %v496 = vxor.u32 %v482, 2147483648
        %v497 = vxor.u32 %v487, 2147483648
        %v498 = vxor.u32 %v492, 2147483648
        %v499 = vmul.f32 %v495, 1.442695
        %v500 = vpow.pop %v499
        %v501 = vmul.f32 %v496, 1.442695
        %v502 = vpow.pop %v501
        %v503 = vmul.f32 %v497, 1.442695
        %v504 = vpow.pop %v503
        %v505 = vmul.f32 %v498, 1.442695
        %v506 = vpow.pop %v505
        %v507 = vadd.f32 %v500, 1.0
        %v508 = vadd.f32 %v502, 1.0
        %v509 = vadd.f32 %v504, 1.0
        %v510 = vadd.f32 %v506, 1.0
        %v511 = vrcp.pop %v507
        %v512 = vmul.f32 1.0, %v511
        %v513 = vrcp.pop %v508
        %v514 = vmul.f32 1.0, %v513
        %v515 = vrcp.pop %v509
        %v516 = vmul.f32 1.0, %v515
        %v517 = vrcp.pop %v510
        %v518 = vmul.f32 1.0, %v517
        %v519 = vstv %s317
        %v521 = vsel %vm318, %v316, 0
        %523 = vmatprep.subr.mxu0 %v283
        %524 = vmatpush1.msra.mxu0 %v282
        %525 = vmatprep.subr.mxu0 %v285
        %526 = vmatpush1.msra.mxu0 %v284
        %527 = vmatprep.subr.mxu0 %v287
        %528 = vmatpush1.msra.mxu0 %v286
        %529 = vmatprep.subr.mxu0 %v289
        %530 = vmatpush1.msra.mxu0 %v288
        %531 = vmatprep.subr.mxu0 0.0
        %532 = vmatpush1.msra.mxu0 0.0
        %533 = vmatprep.subr.mxu0 0.0
        %534 = vmatpush1.msra.mxu0 0.0
        %535 = vmatprep.subr.mxu0 0.0
        %536 = vmatpush1.msra.mxu0 0.0
        %537 = vmatprep.subr.mxu0 0.0
        %538 = vmatpush1.msra.mxu0 0.0
        %539 = vmatprep.subr.mxu0 0.0
        %540 = vmatpush1.msra.mxu0 0.0
        %541 = vmatprep.subr.mxu0 0.0
        %542 = vmatpush1.msra.mxu0 0.0
        %543 = vmatprep.subr.mxu0 0.0
        %544 = vmatpush1.msra.mxu0 0.0
        %545 = vmatprep.subr.mxu0 0.0
        %546 = vmatpush1.msra.mxu0 0.0
        %547 = vmatprep.subr.mxu0 0.0
        %548 = vmatpush1.msra.mxu0 0.0
        %549 = vmatprep.subr.mxu0 0.0
        %550 = vmatpush1.msra.mxu0 0.0
        %551 = vmatprep.subr.mxu0 0.0
        %552 = vmatpush1.msra.mxu0 0.0
        %553 = vmatprep.subr.mxu0 0.0
        %554 = vmatpush1.msra.mxu0 0.0
        %555 = vmatprep.subr.mxu0 0.0
        %556 = vmatpush1.msra.mxu0 0.0
        %557 = vmatprep.subr.mxu0 0.0
        %558 = vmatpush1.msra.mxu0 0.0
        %559 = vmatprep.subr.mxu0 0.0
        %560 = vmatpush1.msra.mxu0 0.0
        %561 = vmatprep.subr.mxu0 0.0
        %562 = vmatpush1.msra.mxu0 0.0
        %563 = vmatprep.subr.mxu0 0.0
        %564 = vmatpush1.msra.mxu0 0.0
        %565 = vmatprep.subr.mxu0 0.0
        %566 = vmatpush1.msra.mxu0 0.0
        %567 = vmatprep.subr.mxu0 0.0
        %568 = vmatpush1.msra.mxu0 0.0
        %569 = vmatprep.subr.mxu0 0.0
        %570 = vmatpush1.msra.mxu0 0.0
        %571 = vmatprep.subr.mxu0 0.0
        %572 = vmatpush1.msra.mxu0 0.0
        %573 = vmatprep.subr.mxu0 0.0
        %574 = vmatpush1.msra.mxu0 0.0
        %575 = vmatprep.subr.mxu0 0.0
        %576 = vmatpush1.msra.mxu0 0.0
        %577 = vmatprep.subr.mxu0 0.0
        %578 = vmatpush1.msra.mxu0 0.0
        %579 = vmatprep.subr.mxu0 0.0
        %580 = vmatpush1.msra.mxu0 0.0
        %581 = vmatprep.subr.mxu0 0.0
        %582 = vmatpush1.msra.mxu0 0.0
        %583 = vmatprep.subr.mxu0 0.0
        %584 = vmatpush1.msra.mxu0 0.0
        %585 = vmatprep.subr.mxu0 0.0
        %586 = vmatpush1.msra.mxu0 0.0
        %587 = vmatprep.mubr.f32.mxu0 0.0
        %588 = vmatmul.mubr.f32.gmra.mrb[0].mxu0 %v521
        %v589 = vpop.f32.mrb[0].mxu0
        %v590 = vadd.f32 %v519, %v589
        %v591 = vpop.f32.mrb[0].mxu0
        %v592 = vadd.f32 %v519, %v591
        %593 = vdwg.mxu0
        %v594 = vxor.u32 %v590, 2147483648
        %v595 = vxor.u32 %v592, 2147483648
        %v596 = vmul.f32 %v594, 1.442695
        %v597 = vpow.pop %v596
        %v598 = vmul.f32 %v595, 1.442695
        %v599 = vpow.pop %v598
        %v600 = vadd.f32 %v597, 1.0
        %v601 = vadd.f32 %v599, 1.0
        %v602 = vrcp.pop %v600
        %v603 = vmul.f32 1.0, %v602
        %v604 = vrcp.pop %v601
        %v605 = vmul.f32 1.0, %v604
        %607 = vset.pattern.permute.xlu0 0
        %608 = vperm.xlu0 %607, %v512
        %v609 = vpop.permute.xlu0 %608
        %612 = vset.pattern.permute.xlu0 0
        %613 = vperm.xlu0 %612, %v514
        %v614 = vpop.permute.xlu0 %613
        %617 = vset.pattern.permute.xlu0 0
        %618 = vperm.xlu0 %617, %v516
        %v619 = vpop.permute.xlu0 %618
        %622 = vset.pattern.permute.xlu0 0
        %623 = vperm.xlu0 %622, %v518
        %v624 = vpop.permute.xlu0 %623
        %v626 = vlaneseq
        %v627 = vshrl.u32 %v626, 7
        %v628 = vsub.s32 0, %v627
        %v629 = vrot.slane %v603, %v628
        %v630 = vlaneseq
        %v631 = vshrl.u32 %v630, 7
        %v632 = vsub.s32 0, %v631
        %v633 = vrot.slane %v605, %v632
        %v634 = vadd.f32 %v609, %v629
        %v635 = vadd.f32 %v609, %v633
        %v636 = vadd.f32 %v614, %v629
        %v637 = vadd.f32 %v614, %v633
        %v638 = vadd.f32 %v619, %v629
        %v639 = vadd.f32 %v619, %v633
        %v640 = vadd.f32 %v624, %v629
        %v641 = vadd.f32 %v624, %v633
        %v642 = vmul.f32 %v282, %v634
        %v643 = vmul.f32 %v283, %v635
        %v644 = vmul.f32 %v284, %v636
        %v645 = vmul.f32 %v285, %v637
        %v646 = vmul.f32 %v286, %v638
        %v647 = vmul.f32 %v287, %v639
        %v648 = vmul.f32 %v288, %v640
        %v649 = vmul.f32 %v289, %v641
        %v650 = vpack.c.bf16 %v644, %v642
        %v651 = vpack.c.bf16 %v645, %v643
        %v652 = vpack.c.bf16 %v648, %v646
        %v653 = vpack.c.bf16 %v649, %v647
        %v658 = vunpack.c.l.b16 %v650
        %v659 = vunpack.c.l.b16 %v651
        %v660 = vunpack.c.h.b16 %v650
        %v661 = vunpack.c.h.b16 %v651
        %v662 = vunpack.c.l.b16 %v652
        %v663 = vunpack.c.l.b16 %v653
        %v664 = vunpack.c.h.b16 %v652
        %v665 = vunpack.c.h.b16 %v653
        %v666 = vpack.c.b16 %v659, %v658
        %v667 = vpack.c.b16 %v661, %v660
        %v668 = vpack.c.b16 %v663, %v662
        %v669 = vpack.c.b16 %v665, %v664
        %674 = vst [vmem:[%s272] sm:$0xff] %v666
        %675 = vst [vmem:[%s272 + $0x8] sm:$0xff] %v667
        %676 = vst [vmem:[%s272 + $0x10] sm:$0xff] %v668
        %677 = vst [vmem:[%s272 + $0x18] sm:$0xff] %v669
        %s678 = sand.u32 %s182, 1
        %s679 = scalar_lea.sflag [#allocation4], %s678
        %s680 = sand.u32 %s182, 1
        %s681 = smul.addr %s680, 32
        %s682 = scalar_lea.vmem [#allocation3], %s681
        // Predicated region
        $region49: #{tpu_custom_call.1} parent=47 // pred_check
          %p683 = pneg %p192
        $region50: #{tpu_custom_call.1} parent=47 // pred_check_branch
          %685 = sbr.rel (%p683) target = $region52
        $region51: #{tpu_custom_call.1} parent=47 // pred_region
          %s687 = ssub.s32 512, 512
          %688 = vsyncadd %s679, %s687
          %s689 = smul.addr %s22, 8
          %s690 = smul.addr %s689, 64
          %s691 = scalar_lea.hbm %s7, %s690
          %s692 = sshll.u32 %s682, 4
          %s693 = int_to_ptr.vmem [resolvable:$true] %s692
          %698 = dma.vmem_to_hbm [thread:$0]  %s693, 512, %s691, %s679, 128, 128, 8
        $region52: #{tpu_custom_call.1} parent=47 // pred_fallthru
          _
      $region48: #{tpu_custom_call.1} parent=5 // pred_fallthru
        _
      %p699 = scmp.le.s32.totalorder 2, %s17
      // Predicated region
      $region53: #{tpu_custom_call.1} parent=5 // pred_check
        %p700 = pneg %p699
      $region54: #{tpu_custom_call.1} parent=5 // pred_check_branch
        %702 = sbr.rel (%p700) target = $region56
      $region55: #{tpu_custom_call.1} parent=5 // pred_region
        %s703 = ssub.s32 %s17, 2
        // Predicated region
        $region57: #{tpu_custom_call.1} parent=55 // pred_check
          %p704 = pneg %p198
        $region58: #{tpu_custom_call.1} parent=55 // pred_check_branch
          %706 = sbr.rel (%p704) target = $region60
        $region59: #{tpu_custom_call.1} parent=55 // pred_region
          %s707 = sand.u32 %s183, 1
          %s708 = scalar_lea.sflag [#allocation4], %s707
          %s709 = sand.u32 %s183, 1
          %s710 = smul.addr %s709, 32
          %s711 = scalar_lea.vmem [#allocation3], %s710
          %712 = dma.done %s708, 512
        $region60: #{tpu_custom_call.1} parent=55 // pred_fallthru
          _
      $region56: #{tpu_custom_call.1} parent=5 // pred_fallthru
        _
    $region6: #{tpu_custom_call.1} parent=1 // loop_footer
      %s21 = sadd.s32 1, %s17
    $region7: #{tpu_custom_call.1} parent=1 // loop_footer_branch
      %16 = sbr.rel target = $region3
    $region8: #{tpu_custom_call.1} parent=1 // loop_exit
      _
    %713 = vsyncpa [#allocation4], 1
    %s714 = scalar_lea.sflag [#allocation4], 1
    %715 = vsyncpa %s714, 1

</llo_original>
